<compile_context>
chip_gen: v5e
topology: v5e:2x2
jax: 0.10.0
libtpu: 0.0.40
codegen_flags: <defaults>
</compile_context>

<pallas_src>
import functools

import numpy as np
import jax
import jax.numpy as jnp
from jax.experimental import pallas as pl
from jax.experimental.pallas import tpu as pltpu

_LANE = 128
_SUBLANE = 32          # int8 native sublane tiling; all row counts are multiples of this
_MAX_BLOCK_ROWS = 512  # (512, 1024) f32 block = 2 MiB per input per grid step
_MAX_COLS = 1024


def _round_up(x, m):
    return (x + m - 1) // m * m


def _cdiv(a, b):
    return (a + b - 1) // b


def _num_tensorcores():
    """Best-effort TensorCores-per-chip detection (2 on v7x, else 1)."""
    try:
        kind = str(jax.devices()[0].device_kind).lower()
        if "v7" in kind:
            return 2
    except Exception:
        pass
    return 1


def _pr_partial_kernel(code_ref, score_ref, *rest, thresholds, has_weights,
                       block_rows, cols):
    """One (chunk, row-tile) grid step of the streaming reduction.

    code_ref    : (BR, COLS) int8   1 -> positive-class weight carrier,
                                    2 -> negative-class weight carrier,
                                    0 -> inert (ignored / padding)
    score_ref   : (BR, COLS) f32    final per-element scores (activation done in XLA)
    weights_ref : (BR, COLS) f32    only when has_weights
    acc_ref     : (2T+2, 8, COLS) f32 resident output block per chunk:
                    [0 : T)   tp partials per threshold
                    [T : 2T)  fp partials per threshold
                    2T        total positive weight  (P = tp + fn)
                    2T+1      total negative weight  (F = fp + tn)
    """
    if has_weights:
        w_ref, acc_ref = rest
    else:
        (acc_ref,) = rest
    n_thresh = len(thresholds)

    # Fresh accumulator at the start of every chunk (output block is resident
    # across the "arbitrary" row-tile grid axis).
    @pl.when(pl.program_id(1) == 0)
    def _init():
        acc_ref[...] = jnp.zeros_like(acc_ref)

    code = code_ref[...].astype(jnp.int32)      # (BR, COLS)
    score = score_ref[...]                      # (BR, COLS) f32

    if has_weights:
        w = w_ref[...].astype(jnp.float32)
        wt = jnp.where(code == 1, w, 0.0)       # weight carried by positive labels
        wf = jnp.where(code == 2, w, 0.0)       # weight carried by negative labels
    else:
        wt = (code == 1).astype(jnp.float32)
        wf = (code == 2).astype(jnp.float32)

    k = block_rows // 8

    def _fold(x):
        # (BR, COLS) -> (8, COLS): sum over groups of 8 sublanes.  The reshape
        # only splits the second-minor dim on an 8-row boundary, so it is
        # layout-preserving; the sum is k-1 pure VPU vector adds.
        return jnp.sum(x.reshape(k, 8, cols), axis=0)

    acc_ref[2 * n_thresh] = acc_ref[2 * n_thresh] + _fold(wt)
    acc_ref[2 * n_thresh + 1] = acc_ref[2 * n_thresh + 1] + _fold(wf)

    for t, th in enumerate(thresholds):         # static unroll; T is small
        pred = score > th
        acc_ref[t] = acc_ref[t] + _fold(jnp.where(pred, wt, 0.0))
        acc_ref[n_thresh + t] = acc_ref[n_thresh + t] + _fold(jnp.where(pred, wf, 0.0))


def _pr_partial_counts(code_rc, score_rc, weights_rc, thresholds, *,
                       nchunk, block_rows, cols, tiles_per_chunk):
    """Run the tiled kernel; return (tp, tn, fp, fn), each of shape (T,)."""
    T = len(thresholds)
    has_weights = weights_rc is not None

    kernel = functools.partial(
        _pr_partial_kernel,
        thresholds=tuple(float(t) for t in thresholds),
        has_weights=has_weights,
        block_rows=block_rows,
        cols=cols,
    )

    def _in_map(c, i):
        return (c * tiles_per_chunk + i, 0)

    in_specs = [pl.BlockSpec((block_rows, cols), _in_map),
                pl.BlockSpec((block_rows, cols), _in_map)]
    args = [code_rc, score_rc]
    if has_weights:
        in_specs.append(pl.BlockSpec((block_rows, cols), _in_map))
        args.append(weights_rc)

    out_shape = jax.ShapeDtypeStruct((nchunk, 2 * T + 2, 8, cols), jnp.float32)
    out_spec = pl.BlockSpec((None, 2 * T + 2, 8, cols), lambda c, i: (c, 0, 0, 0))

    def _call(dim_sems):
        return pl.pallas_call(
            kernel,
            out_shape=out_shape,
            grid_spec=pltpu.PrefetchScalarGridSpec(
                num_scalar_prefetch=0,
                grid=(nchunk, tiles_per_chunk),
                in_specs=in_specs,
                out_specs=out_spec,
            ),
            compiler_params=pltpu.CompilerParams(
                dimension_semantics=dim_sems,
                vmem_limit_bytes=32 * 1024 * 1024,
            ),
        )(*args)

    # Prefer real core-sharding of the chunk axis on multi-TC chips; fall back
    # to plain semantics if that lowering path is unavailable.
    sem_options = []
    if nchunk > 1 and hasattr(pltpu, "CORE_PARALLEL"):
        sem_options.append((pltpu.CORE_PARALLEL, "arbitrary"))
    sem_options.append(("parallel" if nchunk > 1 else "arbitrary", "arbitrary"))

    partials = None
    for idx, sems in enumerate(sem_options):
        try:
            partials = jax.block_until_ready(_call(sems))
            break
        except Exception:
            if idx == len(sem_options) - 1:
                raise

    # Tiny XLA epilogue: (nchunk, 2T+2, 8, cols) -> (2T+2,)
    sums = jnp.sum(partials, axis=(0, 2, 3))
    tp = sums[:T]
    fp = sums[T:2 * T]
    p_total = sums[2 * T]
    f_total = sums[2 * T + 1]
    fn = p_total - tp
    tn = f_total - fp
    return tp, tn, fp, fn


class PrecisionRecall:
    """JAX/Pallas port of the PyTorch PrecisionRecall metric module."""

    def __init__(self, dim=1, ignore_idx=-1, thresholds=0.5,
                 use_sigmoid_score=False, encode_background_as_zeros=True):
        if not isinstance(thresholds, (list, tuple)):
            thresholds = [thresholds]
        n = len(thresholds)
        # register_buffer equivalents (deterministic zero init)
        self.prec_total = jnp.zeros((n,), jnp.float32)
        self.prec_count = jnp.zeros((n,), jnp.float32)
        self.rec_total = jnp.zeros((n,), jnp.float32)
        self.rec_count = jnp.zeros((n,), jnp.float32)
        self._ignore_idx = ignore_idx
        # TODO(synk): self._dim is stored but, exactly like the reference
        # forward(), the class axis is always taken to be the LAST dim of preds.
        self._dim = dim
        self._thresholds = list(thresholds)
        self._use_sigmoid_score = use_sigmoid_score
        self._encode_background_as_zeros = encode_background_as_zeros

    # ---- tiling: dense lane/sublane 2D slab, generation-aware chunking ----
    def _tiling(self, n_elems):
        nchunk = _num_tensorcores()
        n_elems = max(int(n_elems), 1)
        cols = min(_MAX_COLS, max(_LANE, _round_up(_cdiv(n_elems, _SUBLANE), _LANE)))
        rows = _cdiv(n_elems, cols)
        block_rows = min(_MAX_BLOCK_ROWS, _round_up(rows, _SUBLANE))
        tiles = _cdiv(rows, block_rows)
        tiles_per_chunk = max(1, _cdiv(tiles, nchunk))
        rows_pad = nchunk * tiles_per_chunk * block_rows
        return nchunk, cols, block_rows, tiles_per_chunk, rows_pad

    def forward(self, labels, preds, weights=None):
        if self._encode_background_as_zeros:
            assert self._use_sigmoid_score is True
        labels = jnp.asarray(labels)
        preds = jnp.asarray(preds).astype(jnp.float32)
        C = preds.shape[-1]

        labels_flat = labels.reshape(-1).astype(jnp.int32)   # (E,)
        preds_ec = preds.reshape(-1, C)                       # (E, C)

        # Class-axis reduction + activation in XLA (fused with the reduce the
        # reference needs anyway).  Monotone rewrites:
        #   max_c sigmoid(x_c)        == sigmoid(max_c x_c)
        #   max_{c>=1} softmax(x)_c   == exp(max_{c>=1} x_c - logsumexp(x))
        if self._encode_background_as_zeros:
            score = jax.nn.sigmoid(jnp.max(preds_ec, axis=-1))
        else:
            cls_keep = jnp.arange(C) >= 1
            masked = jnp.where(cls_keep, preds_ec, -jnp.inf)
            if self._use_sigmoid_score:
                score = jax.nn.sigmoid(jnp.max(masked, axis=-1))
            else:
                lse = jax.scipy.special.logsumexp(preds_ec, axis=-1)
                score = jnp.exp(jnp.max(masked, axis=-1) - lse)
        score = score.astype(jnp.float32)

        # int8 label encoding: 1 -> carries positive weight, 2 -> carries
        # negative weight, 0 -> inert.  Exactly mirrors the reference:
        # default weights = (labels != ignore_idx), trues = labels > 0,
        # falses = labels == 0.
        is_pos = labels_flat > 0
        is_zero = labels_flat == 0
        if weights is None:
            valid = labels_flat != self._ignore_idx
            code = jnp.where(is_pos & valid, 1,
                             jnp.where(is_zero & valid, 2, 0)).astype(jnp.int8)
            weights_flat = None
        else:
            code = jnp.where(is_pos, 1, jnp.where(is_zero, 2, 0)).astype(jnp.int8)
            weights_flat = jnp.asarray(weights).reshape(-1).astype(jnp.float32)

        E = int(labels_flat.shape[0])
        nchunk, cols, block_rows, tiles_per_chunk, rows_pad = self._tiling(E)
        total = rows_pad * cols
        pad = total - E
        # Padding is inert: code 0 never contributes, explicit weights pad to 0.
        code_rc = jnp.pad(code, (0, pad)).reshape(rows_pad, cols)
        score_rc = jnp.pad(score, (0, pad)).reshape(rows_pad, cols)
        weights_rc = (None if weights_flat is None
                      else jnp.pad(weights_flat, (0, pad)).reshape(rows_pad, cols))

        tp, tn, fp, fn = _pr_partial_counts(
            code_rc, score_rc, weights_rc, self._thresholds,
            nchunk=nchunk, block_rows=block_rows, cols=cols,
            tiles_per_chunk=tiles_per_chunk)
        del tn  # computed for parity with the reference; unused by the update

        rec_count = tp + fn
        prec_count = tp + fp
        rec_pos = rec_count > 0
        prec_pos = prec_count > 0
        self.rec_count = jnp.where(rec_pos, self.rec_count + rec_count, self.rec_count)
        self.rec_total = jnp.where(rec_pos, self.rec_total + tp, self.rec_total)
        self.prec_count = jnp.where(prec_pos, self.prec_count + prec_count, self.prec_count)
        self.prec_total = jnp.where(prec_pos, self.prec_total + tp, self.prec_total)
        return self.value

    @property
    def value(self):
        pc = jnp.maximum(self.prec_count, 1.0)
        rc = jnp.maximum(self.rec_count, 1.0)
        return self.prec_total / pc, self.rec_total / rc

    @property
    def thresholds(self):
        return self._thresholds

    def clear(self):
        self.rec_count = jnp.zeros_like(self.rec_count)
        self.prec_count = jnp.zeros_like(self.prec_count)
        self.prec_total = jnp.zeros_like(self.prec_total)
        self.rec_total = jnp.zeros_like(self.rec_total)


def _reference_precision_recall(labels, preds, weights, thresholds, ignore_idx,
                                use_sigmoid_score, encode_background_as_zeros):
    """Pure-JAX mirror of the PyTorch semantics (single forward from zeros)."""
    if not isinstance(thresholds, (list, tuple)):
        thresholds = [thresholds]
    if encode_background_as_zeros:
        total_scores = jax.nn.sigmoid(preds)
    elif use_sigmoid_score:
        total_scores = jax.nn.sigmoid(preds)[..., 1:]
    else:
        total_scores = jax.nn.softmax(preds, axis=-1)[..., 1:]
    scores = jnp.max(total_scores, axis=-1)
    if weights is None:
        w = (labels != ignore_idx).astype(jnp.float32)
    else:
        w = jnp.asarray(weights).astype(jnp.float32)
    N = labels.shape[0]
    lab = labels.reshape(N, -1)
    sc = scores.reshape(N, -1)
    w = w.reshape(N, -1)
    precs, recs = [], []
    for th in thresholds:
        pt = sc > th
        tp = jnp.sum(w * ((lab > 0) & pt).astype(jnp.float32))
        fp = jnp.sum(w * ((lab == 0) & pt).astype(jnp.float32))
        fn = jnp.sum(w * ((lab > 0) & ~pt).astype(jnp.float32))
        precs.append(tp / jnp.maximum(tp + fp, 1.0))
        recs.append(tp / jnp.maximum(tp + fn, 1.0))
    return jnp.stack(precs), jnp.stack(recs)


if __name__ == "__main__":
    key = jax.random.PRNGKey(0)
    k1, k2, k3 = jax.random.split(key, 3)

    # Small shapes consistent with the module: labels (N, H, W), preds (N, H, W, C)
    N, H, W, C = 2, 16, 16, 4
    preds = jax.random.normal(k1, (N, H, W, C), dtype=jnp.float32)
    labels = jax.random.randint(k2, (N, H, W), -1, C, dtype=jnp.int32)  # -1 == ignore

    # --- test 1: sigmoid / encode_background_as_zeros path, default weights ---
    thresholds = [0.3, 0.5, 0.7]
    metric = PrecisionRecall(thresholds=thresholds,
                             use_sigmoid_score=True,
                             encode_background_as_zeros=True)
    prec, rec = metric.forward(labels, preds)
    prec = jax.block_until_ready(prec)
    rec = jax.block_until_ready(rec)
    prec_r, rec_r = _reference_precision_recall(
        labels, preds, None, thresholds, -1,
        use_sigmoid_score=True, encode_background_as_zeros=True)
    np.testing.assert_allclose(np.asarray(prec), np.asarray(prec_r), rtol=1e-5, atol=1e-5)
    np.testing.assert_allclose(np.asarray(rec), np.asarray(rec_r), rtol=1e-5, atol=1e-5)

    # --- test 2: softmax path with an explicit weights tensor ---
    weights = (jax.random.uniform(k3, (N, H, W)) > 0.2).astype(jnp.float32)
    metric2 = PrecisionRecall(thresholds=0.25,
                              use_sigmoid_score=False,
                              encode_background_as_zeros=False)
    prec2, rec2 = metric2.forward(labels, preds, weights)
    prec2 = jax.block_until_ready(prec2)
    rec2 = jax.block_until_ready(rec2)
    prec2_r, rec2_r = _reference_precision_recall(
        labels, preds, weights, 0.25, -1,
        use_sigmoid_score=False, encode_background_as_zeros=False)
    np.testing.assert_allclose(np.asarray(prec2), np.asarray(prec2_r), rtol=1e-4, atol=1e-5)
    np.testing.assert_allclose(np.asarray(rec2), np.asarray(rec2_r), rtol=1e-4, atol=1e-5)

    print("KERNEL_OK")
</pallas_src>

<mosaic_0001>
module attributes {stable_mosaic.version = 11 : i64} {
  func.func @_pr_partial_kernel(%arg0: i32, %arg1: i32, %arg2: memref<32x128xi8, #tpu.memory_space<vmem>>, %arg3: memref<32x128xf32, #tpu.memory_space<vmem>>, %arg4: memref<1x8x8x128xf32, #tpu.memory_space<vmem>>) attributes {dimension_semantics = [#tpu.dimension_semantics<arbitrary>, #tpu.dimension_semantics<arbitrary>], iteration_bounds = array<i64: 1, 1>, scalar_prefetch = 0 : i64, scratch_operands = 0 : i64, tpu.core_type = #tpu.core_type<tc>, window_params = [{transform_indices = @transform_0, window_bounds = array<i64: 32, 128>}, {transform_indices = @transform_1, window_bounds = array<i64: 32, 128>}, {transform_indices = @transform_2, window_bounds = array<i64: 1, 8, 8, 128>}]} {
    %c0_i32 = arith.constant 0 : i32
    %0 = arith.cmpi eq, %arg1, %c0_i32 : i32
    %1 = arith.extui %0 : i1 to i32
    %c0_i32_0 = arith.constant 0 : i32
    %2 = arith.cmpi ne, %1, %c0_i32_0 : i32
    scf.if %2 {
      %cst_77 = arith.constant 0.000000e+00 : f32
      %96 = vector.broadcast %cst_77 : f32 to vector<8x8x128xf32>
      %c0_78 = arith.constant 0 : index
      %c0_79 = arith.constant 0 : index
      %c0_80 = arith.constant 0 : index
      %c0_81 = arith.constant 0 : index
      %97 = vector.load %arg4[%c0_78, %c0_79, %c0_80, %c0_81] : memref<1x8x8x128xf32, #tpu.memory_space<vmem>>, vector<1x8x8x128xf32>
      %98 = vector.shape_cast %97 : vector<1x8x8x128xf32> to vector<8x8x128xf32>
      %99 = vector.shape_cast %96 : vector<8x8x128xf32> to vector<1x8x8x128xf32>
      tpu.vector_store %arg4[%c0_78, %c0_79, %c0_80, %c0_81], %99 {strides = array<i32>} : memref<1x8x8x128xf32, #tpu.memory_space<vmem>>, vector<1x8x8x128xf32>,
    } else {
    }
    %c0 = arith.constant 0 : index
    %c0_1 = arith.constant 0 : index
    %3 = vector.load %arg2[%c0, %c0_1] : memref<32x128xi8, #tpu.memory_space<vmem>>, vector<32x128xi8>
    %4 = arith.extsi %3 : vector<32x128xi8> to vector<32x128xi32>
    %c0_2 = arith.constant 0 : index
    %c0_3 = arith.constant 0 : index
    %5 = vector.load %arg3[%c0_2, %c0_3] : memref<32x128xf32, #tpu.memory_space<vmem>>, vector<32x128xf32>
    %c1_i32 = arith.constant 1 : i32
    %6 = vector.broadcast %c1_i32 : i32 to vector<32x128xi32>
    %7 = arith.cmpi eq, %4, %6 : vector<32x128xi32>
    %8 = arith.extui %7 : vector<32x128xi1> to vector<32x128xi32>
    %9 = arith.sitofp %8 : vector<32x128xi32> to vector<32x128xf32>
    %c2_i32 = arith.constant 2 : i32
    %10 = vector.broadcast %c2_i32 : i32 to vector<32x128xi32>
    %11 = arith.cmpi eq, %4, %10 : vector<32x128xi32>
    %12 = arith.extui %11 : vector<32x128xi1> to vector<32x128xi32>
    %13 = arith.sitofp %12 : vector<32x128xi32> to vector<32x128xf32>
    %c0_4 = arith.constant 0 : index
    %c6 = arith.constant 6 : index
    %c0_5 = arith.constant 0 : index
    %c0_6 = arith.constant 0 : index
    %14 = vector.load %arg4[%c0_4, %c6, %c0_5, %c0_6] : memref<1x8x8x128xf32, #tpu.memory_space<vmem>>, vector<1x1x8x128xf32>
    %15 = vector.shape_cast %14 : vector<1x1x8x128xf32> to vector<8x128xf32>
    %16 = vector.shape_cast %9 : vector<32x128xf32> to vector<4x8x128xf32>
    %cst = arith.constant dense<0.000000e+00> : vector<8x128xf32>
    %17 = vector.multi_reduction <add>, %16, %cst [0] : vector<4x8x128xf32> to vector<8x128xf32>
    %18 = arith.addf %15, %17 : vector<8x128xf32>
    %c0_7 = arith.constant 0 : index
    %c6_8 = arith.constant 6 : index
    %c0_9 = arith.constant 0 : index
    %c0_10 = arith.constant 0 : index
    %19 = vector.load %arg4[%c0_7, %c6_8, %c0_9, %c0_10] : memref<1x8x8x128xf32, #tpu.memory_space<vmem>>, vector<1x1x8x128xf32>
    %20 = vector.shape_cast %19 : vector<1x1x8x128xf32> to vector<8x128xf32>
    %21 = vector.shape_cast %18 : vector<8x128xf32> to vector<1x1x8x128xf32>
    tpu.vector_store %arg4[%c0_7, %c6_8, %c0_9, %c0_10], %21 {strides = array<i32>} : memref<1x8x8x128xf32, #tpu.memory_space<vmem>>, vector<1x1x8x128xf32>,
    %c0_11 = arith.constant 0 : index
    %c7 = arith.constant 7 : index
    %c0_12 = arith.constant 0 : index
    %c0_13 = arith.constant 0 : index
    %22 = vector.load %arg4[%c0_11, %c7, %c0_12, %c0_13] : memref<1x8x8x128xf32, #tpu.memory_space<vmem>>, vector<1x1x8x128xf32>
    %23 = vector.shape_cast %22 : vector<1x1x8x128xf32> to vector<8x128xf32>
    %24 = vector.shape_cast %13 : vector<32x128xf32> to vector<4x8x128xf32>
    %cst_14 = arith.constant dense<0.000000e+00> : vector<8x128xf32>
    %25 = vector.multi_reduction <add>, %24, %cst_14 [0] : vector<4x8x128xf32> to vector<8x128xf32>
    %26 = arith.addf %23, %25 : vector<8x128xf32>
    %c0_15 = arith.constant 0 : index
    %c7_16 = arith.constant 7 : index
    %c0_17 = arith.constant 0 : index
    %c0_18 = arith.constant 0 : index
    %27 = vector.load %arg4[%c0_15, %c7_16, %c0_17, %c0_18] : memref<1x8x8x128xf32, #tpu.memory_space<vmem>>, vector<1x1x8x128xf32>
    %28 = vector.shape_cast %27 : vector<1x1x8x128xf32> to vector<8x128xf32>
    %29 = vector.shape_cast %26 : vector<8x128xf32> to vector<1x1x8x128xf32>
    tpu.vector_store %arg4[%c0_15, %c7_16, %c0_17, %c0_18], %29 {strides = array<i32>} : memref<1x8x8x128xf32, #tpu.memory_space<vmem>>, vector<1x1x8x128xf32>,
    %cst_19 = arith.constant 3.000000e-01 : f32
    %30 = vector.broadcast %cst_19 : f32 to vector<32x128xf32>
    %31 = arith.cmpf ogt, %5, %30 : vector<32x128xf32>
    %c0_20 = arith.constant 0 : index
    %c0_21 = arith.constant 0 : index
    %c0_22 = arith.constant 0 : index
    %c0_23 = arith.constant 0 : index
    %32 = vector.load %arg4[%c0_20, %c0_21, %c0_22, %c0_23] : memref<1x8x8x128xf32, #tpu.memory_space<vmem>>, vector<1x1x8x128xf32>
    %33 = vector.shape_cast %32 : vector<1x1x8x128xf32> to vector<8x128xf32>
    %cst_24 = arith.constant 0.000000e+00 : f32
    %34 = vector.broadcast %cst_24 : f32 to vector<32x128xf32>
    %35 = arith.select %31, %9, %34 : vector<32x128xi1>, vector<32x128xf32>
    %36 = vector.shape_cast %35 : vector<32x128xf32> to vector<4x8x128xf32>
    %cst_25 = arith.constant dense<0.000000e+00> : vector<8x128xf32>
    %37 = vector.multi_reduction <add>, %36, %cst_25 [0] : vector<4x8x128xf32> to vector<8x128xf32>
    %38 = arith.addf %33, %37 : vector<8x128xf32>
    %c0_26 = arith.constant 0 : index
    %c0_27 = arith.constant 0 : index
    %c0_28 = arith.constant 0 : index
    %c0_29 = arith.constant 0 : index
    %39 = vector.load %arg4[%c0_26, %c0_27, %c0_28, %c0_29] : memref<1x8x8x128xf32, #tpu.memory_space<vmem>>, vector<1x1x8x128xf32>
    %40 = vector.shape_cast %39 : vector<1x1x8x128xf32> to vector<8x128xf32>
    %41 = vector.shape_cast %38 : vector<8x128xf32> to vector<1x1x8x128xf32>
    tpu.vector_store %arg4[%c0_26, %c0_27, %c0_28, %c0_29], %41 {strides = array<i32>} : memref<1x8x8x128xf32, #tpu.memory_space<vmem>>, vector<1x1x8x128xf32>,
    %c0_30 = arith.constant 0 : index
    %c3 = arith.constant 3 : index
    %c0_31 = arith.constant 0 : index
    %c0_32 = arith.constant 0 : index
    %42 = vector.load %arg4[%c0_30, %c3, %c0_31, %c0_32] : memref<1x8x8x128xf32, #tpu.memory_space<vmem>>, vector<1x1x8x128xf32>
    %43 = vector.shape_cast %42 : vector<1x1x8x128xf32> to vector<8x128xf32>
    %cst_33 = arith.constant 0.000000e+00 : f32
    %44 = vector.broadcast %cst_33 : f32 to vector<32x128xf32>
    %45 = arith.select %31, %13, %44 : vector<32x128xi1>, vector<32x128xf32>
    %46 = vector.shape_cast %45 : vector<32x128xf32> to vector<4x8x128xf32>
    %cst_34 = arith.constant dense<0.000000e+00> : vector<8x128xf32>
    %47 = vector.multi_reduction <add>, %46, %cst_34 [0] : vector<4x8x128xf32> to vector<8x128xf32>
    %48 = arith.addf %43, %47 : vector<8x128xf32>
    %c0_35 = arith.constant 0 : index
    %c3_36 = arith.constant 3 : index
    %c0_37 = arith.constant 0 : index
    %c0_38 = arith.constant 0 : index
    %49 = vector.load %arg4[%c0_35, %c3_36, %c0_37, %c0_38] : memref<1x8x8x128xf32, #tpu.memory_space<vmem>>, vector<1x1x8x128xf32>
    %50 = vector.shape_cast %49 : vector<1x1x8x128xf32> to vector<8x128xf32>
    %51 = vector.shape_cast %48 : vector<8x128xf32> to vector<1x1x8x128xf32>
    tpu.vector_store %arg4[%c0_35, %c3_36, %c0_37, %c0_38], %51 {strides = array<i32>} : memref<1x8x8x128xf32, #tpu.memory_space<vmem>>, vector<1x1x8x128xf32>,
    %cst_39 = arith.constant 5.000000e-01 : f32
    %52 = vector.broadcast %cst_39 : f32 to vector<32x128xf32>
    %53 = arith.cmpf ogt, %5, %52 : vector<32x128xf32>
    %c0_40 = arith.constant 0 : index
    %c1 = arith.constant 1 : index
    %c0_41 = arith.constant 0 : index
    %c0_42 = arith.constant 0 : index
    %54 = vector.load %arg4[%c0_40, %c1, %c0_41, %c0_42] : memref<1x8x8x128xf32, #tpu.memory_space<vmem>>, vector<1x1x8x128xf32>
    %55 = vector.shape_cast %54 : vector<1x1x8x128xf32> to vector<8x128xf32>
    %cst_43 = arith.constant 0.000000e+00 : f32
    %56 = vector.broadcast %cst_43 : f32 to vector<32x128xf32>
    %57 = arith.select %53, %9, %56 : vector<32x128xi1>, vector<32x128xf32>
    %58 = vector.shape_cast %57 : vector<32x128xf32> to vector<4x8x128xf32>
    %cst_44 = arith.constant dense<0.000000e+00> : vector<8x128xf32>
    %59 = vector.multi_reduction <add>, %58, %cst_44 [0] : vector<4x8x128xf32> to vector<8x128xf32>
    %60 = arith.addf %55, %59 : vector<8x128xf32>
    %c0_45 = arith.constant 0 : index
    %c1_46 = arith.constant 1 : index
    %c0_47 = arith.constant 0 : index
    %c0_48 = arith.constant 0 : index
    %61 = vector.load %arg4[%c0_45, %c1_46, %c0_47, %c0_48] : memref<1x8x8x128xf32, #tpu.memory_space<vmem>>, vector<1x1x8x128xf32>
    %62 = vector.shape_cast %61 : vector<1x1x8x128xf32> to vector<8x128xf32>
    %63 = vector.shape_cast %60 : vector<8x128xf32> to vector<1x1x8x128xf32>
    tpu.vector_store %arg4[%c0_45, %c1_46, %c0_47, %c0_48], %63 {strides = array<i32>} : memref<1x8x8x128xf32, #tpu.memory_space<vmem>>, vector<1x1x8x128xf32>,
    %c0_49 = arith.constant 0 : index
    %c4 = arith.constant 4 : index
    %c0_50 = arith.constant 0 : index
    %c0_51 = arith.constant 0 : index
    %64 = vector.load %arg4[%c0_49, %c4, %c0_50, %c0_51] : memref<1x8x8x128xf32, #tpu.memory_space<vmem>>, vector<1x1x8x128xf32>
    %65 = vector.shape_cast %64 : vector<1x1x8x128xf32> to vector<8x128xf32>
    %cst_52 = arith.constant 0.000000e+00 : f32
    %66 = vector.broadcast %cst_52 : f32 to vector<32x128xf32>
    %67 = arith.select %53, %13, %66 : vector<32x128xi1>, vector<32x128xf32>
    %68 = vector.shape_cast %67 : vector<32x128xf32> to vector<4x8x128xf32>
    %cst_53 = arith.constant dense<0.000000e+00> : vector<8x128xf32>
    %69 = vector.multi_reduction <add>, %68, %cst_53 [0] : vector<4x8x128xf32> to vector<8x128xf32>
    %70 = arith.addf %65, %69 : vector<8x128xf32>
    %c0_54 = arith.constant 0 : index
    %c4_55 = arith.constant 4 : index
    %c0_56 = arith.constant 0 : index
    %c0_57 = arith.constant 0 : index
    %71 = vector.load %arg4[%c0_54, %c4_55, %c0_56, %c0_57] : memref<1x8x8x128xf32, #tpu.memory_space<vmem>>, vector<1x1x8x128xf32>
    %72 = vector.shape_cast %71 : vector<1x1x8x128xf32> to vector<8x128xf32>
    %73 = vector.shape_cast %70 : vector<8x128xf32> to vector<1x1x8x128xf32>
    tpu.vector_store %arg4[%c0_54, %c4_55, %c0_56, %c0_57], %73 {strides = array<i32>} : memref<1x8x8x128xf32, #tpu.memory_space<vmem>>, vector<1x1x8x128xf32>,
    %cst_58 = arith.constant 0.699999988 : f32
    %74 = vector.broadcast %cst_58 : f32 to vector<32x128xf32>
    %75 = arith.cmpf ogt, %5, %74 : vector<32x128xf32>
    %c0_59 = arith.constant 0 : index
    %c2 = arith.constant 2 : index
    %c0_60 = arith.constant 0 : index
    %c0_61 = arith.constant 0 : index
    %76 = vector.load %arg4[%c0_59, %c2, %c0_60, %c0_61] : memref<1x8x8x128xf32, #tpu.memory_space<vmem>>, vector<1x1x8x128xf32>
    %77 = vector.shape_cast %76 : vector<1x1x8x128xf32> to vector<8x128xf32>
    %cst_62 = arith.constant 0.000000e+00 : f32
    %78 = vector.broadcast %cst_62 : f32 to vector<32x128xf32>
    %79 = arith.select %75, %9, %78 : vector<32x128xi1>, vector<32x128xf32>
    %80 = vector.shape_cast %79 : vector<32x128xf32> to vector<4x8x128xf32>
    %cst_63 = arith.constant dense<0.000000e+00> : vector<8x128xf32>
    %81 = vector.multi_reduction <add>, %80, %cst_63 [0] : vector<4x8x128xf32> to vector<8x128xf32>
    %82 = arith.addf %77, %81 : vector<8x128xf32>
    %c0_64 = arith.constant 0 : index
    %c2_65 = arith.constant 2 : index
    %c0_66 = arith.constant 0 : index
    %c0_67 = arith.constant 0 : index
    %83 = vector.load %arg4[%c0_64, %c2_65, %c0_66, %c0_67] : memref<1x8x8x128xf32, #tpu.memory_space<vmem>>, vector<1x1x8x128xf32>
    %84 = vector.shape_cast %83 : vector<1x1x8x128xf32> to vector<8x128xf32>
    %85 = vector.shape_cast %82 : vector<8x128xf32> to vector<1x1x8x128xf32>
    tpu.vector_store %arg4[%c0_64, %c2_65, %c0_66, %c0_67], %85 {strides = array<i32>} : memref<1x8x8x128xf32, #tpu.memory_space<vmem>>, vector<1x1x8x128xf32>,
    %c0_68 = arith.constant 0 : index
    %c5 = arith.constant 5 : index
    %c0_69 = arith.constant 0 : index
    %c0_70 = arith.constant 0 : index
    %86 = vector.load %arg4[%c0_68, %c5, %c0_69, %c0_70] : memref<1x8x8x128xf32, #tpu.memory_space<vmem>>, vector<1x1x8x128xf32>
    %87 = vector.shape_cast %86 : vector<1x1x8x128xf32> to vector<8x128xf32>
    %cst_71 = arith.constant 0.000000e+00 : f32
    %88 = vector.broadcast %cst_71 : f32 to vector<32x128xf32>
    %89 = arith.select %75, %13, %88 : vector<32x128xi1>, vector<32x128xf32>
    %90 = vector.shape_cast %89 : vector<32x128xf32> to vector<4x8x128xf32>
    %cst_72 = arith.constant dense<0.000000e+00> : vector<8x128xf32>
    %91 = vector.multi_reduction <add>, %90, %cst_72 [0] : vector<4x8x128xf32> to vector<8x128xf32>
    %92 = arith.addf %87, %91 : vector<8x128xf32>
    %c0_73 = arith.constant 0 : index
    %c5_74 = arith.constant 5 : index
    %c0_75 = arith.constant 0 : index
    %c0_76 = arith.constant 0 : index
    %93 = vector.load %arg4[%c0_73, %c5_74, %c0_75, %c0_76] : memref<1x8x8x128xf32, #tpu.memory_space<vmem>>, vector<1x1x8x128xf32>
    %94 = vector.shape_cast %93 : vector<1x1x8x128xf32> to vector<8x128xf32>
    %95 = vector.shape_cast %92 : vector<8x128xf32> to vector<1x1x8x128xf32>
    tpu.vector_store %arg4[%c0_73, %c5_74, %c0_75, %c0_76], %95 {strides = array<i32>} : memref<1x8x8x128xf32, #tpu.memory_space<vmem>>, vector<1x1x8x128xf32>,
    return
  }
  func.func @transform_0(%arg0: i32, %arg1: i32) -> (i32, i32) {
    %c1_i32 = arith.constant 1 : i32
    %0 = arith.muli %arg0, %c1_i32 : i32
    %1 = arith.addi %0, %arg1 : i32
    %c0_i32 = arith.constant 0 : i32
    %c0_i32_0 = arith.constant 0 : i32
    return %1, %c0_i32 : i32, i32
  }
  func.func @transform_1(%arg0: i32, %arg1: i32) -> (i32, i32) {
    %c1_i32 = arith.constant 1 : i32
    %0 = arith.muli %arg0, %c1_i32 : i32
    %1 = arith.addi %0, %arg1 : i32
    %c0_i32 = arith.constant 0 : i32
    %c0_i32_0 = arith.constant 0 : i32
    return %1, %c0_i32 : i32, i32
  }
  func.func @transform_2(%arg0: i32, %arg1: i32) -> (i32, i32, i32, i32) {
    %c0_i32 = arith.constant 0 : i32
    %c0_i32_0 = arith.constant 0 : i32
    %c0_i32_1 = arith.constant 0 : i32
    %c0_i32_2 = arith.constant 0 : i32
    return %arg0, %c0_i32, %c0_i32_0, %c0_i32_1 : i32, i32, i32, i32
  }
}

</mosaic_0001>

<llo_original>
// kernel: tpu_custom_call.1
$region0: #{tpu_custom_call.1}
  #allocation0 [shape = 'u32[]', space=smem, size = 0x4, offset = 0x4, fixed_abs, tag = 'smem constant byte address 0x4 - core index']
  #allocation1 [shape = 'u32[72,128]{1,0:T(1,128)}', space=vmem, size = 0x9000, scoped, tag = 'internal scratch']
  %s0 = inlined_call_operand.hbm [shape: s8[32,128], index: 0, kind: input, shape index: {}]
  %s1 = inlined_call_operand.hbm [shape: f32[32,128], index: 1, kind: input, shape index: {}]
  %s2 = inlined_call_operand.hbm [shape: f32[1,8,8,128], index: 2, kind: output, shape index: {}]
  %s3 = sld [smem:[#allocation0]]
  $region30: #{tpu_custom_call.1} parent=0
    _
  %s5 = ssub.s32 1, %s3
  %s6 = scalar_select 0, %s5, %s3
  $region1: #{tpu_custom_call.1} parent=0
    #allocation2 [shape = 'u8[4096]{0}', space=vmem, size = 0x1000, scoped, tag = 'input window, operand 0, single buffered']
    #allocation3 [shape = 's32[1]{0}', space=sflag, size = 0x4, scoped, tag = 'scoped memory for tpu_custom_call.1']
    #allocation4 [shape = 's32[1]{0}', space=sflag, size = 0x4, scoped, tag = 'scoped memory for tpu_custom_call.1']
    #allocation5 [shape = 'u8[16384]{0}', space=vmem, size = 0x4000, scoped, tag = 'input window, operand 1, single buffered']
    #allocation6 [shape = 's32[1]{0}', space=sflag, size = 0x4, scoped, tag = 'scoped memory for tpu_custom_call.1']
    #allocation7 [shape = 'u8[32768]{0}', space=vmem, size = 0x8000, scoped, tag = 'output window, operand 0, single buffered']
    %7 = vsyncpa [#allocation3], 0
    %8 = vsyncpa [#allocation6], 0
    %9 = vsyncpa [#allocation4], 0
    // Predicated region
    $region2: #{tpu_custom_call.1} parent=1 // pred_check
      _
    $region3: #{tpu_custom_call.1} parent=1 // pred_check_branch
      %11 = sbr.rel (0) target = $region5
    $region4: #{tpu_custom_call.1} parent=1 // pred_region
      %s12 = sadd.s32 0, 0
      %14 = vsyncadd [#allocation3], 0
      %s15 = smul.addr %s12, 8
      %s16 = scalar_lea.hbm %s0, %s15
      %s18 = sshll.u32 %s16, 4
      %s19 = int_to_ptr.hbm [resolvable:$true] %s18
      %s20 = sshll.u32 [#allocation2], 4
      %s21 = int_to_ptr.vmem [resolvable:$true] %s20
      %23 = dma.hbm_to_vmem [thread:$0]  %s19, 128, %s21, [#allocation3]
    $region5: #{tpu_custom_call.1} parent=1 // pred_fallthru
      _
    // Predicated region
    $region6: #{tpu_custom_call.1} parent=1 // pred_check
      _
    $region7: #{tpu_custom_call.1} parent=1 // pred_check_branch
      %25 = sbr.rel (0) target = $region9
    $region8: #{tpu_custom_call.1} parent=1 // pred_region
      %s26 = sadd.s32 0, 0
      %s27 = smul.u32 4, %s26
      %29 = vsyncadd [#allocation6], 0
      %s30 = smul.addr %s27, 8
      %s31 = scalar_lea.hbm %s1, %s30
      %s32 = sshll.u32 %s31, 4
      %s33 = int_to_ptr.hbm [resolvable:$true] %s32
      %s34 = sshll.u32 [#allocation5], 4
      %s35 = int_to_ptr.vmem [resolvable:$true] %s34
      %40 = dma.hbm_to_vmem [thread:$0]  %s33, 512, %s35, [#allocation6], 128, 128, 8
    $region9: #{tpu_custom_call.1} parent=1 // pred_fallthru
      _
    // Predicated region
    $region10: #{tpu_custom_call.1} parent=1 // pred_check
      _
    $region11: #{tpu_custom_call.1} parent=1 // pred_check_branch
      %42 = sbr.rel (0) target = $region13
    $region12: #{tpu_custom_call.1} parent=1 // pred_region
      %44 = dma.done [#allocation3], 128
    $region13: #{tpu_custom_call.1} parent=1 // pred_fallthru
      _
    // Predicated region
    $region14: #{tpu_custom_call.1} parent=1 // pred_check
      _
    $region15: #{tpu_custom_call.1} parent=1 // pred_check_branch
      %46 = sbr.rel (0) target = $region17
    $region16: #{tpu_custom_call.1} parent=1 // pred_region
      %48 = dma.done [#allocation6], 512
    $region17: #{tpu_custom_call.1} parent=1 // pred_fallthru
      _
    %s49 = sadd.s32 0, 0
    %s50 = sadd.s32 0, 0
    %s51 = smul.u32 4, %s50
    %p52 = scmp.eq.s32.totalorder 0, 0
    // Predicated region
    $region18: #{tpu_custom_call.1} parent=1 // pred_check
      %p53 = pneg %p52
    $region19: #{tpu_custom_call.1} parent=1 // pred_check_branch
      %55 = sbr.rel (%p53) target = $region21
    $region20: #{tpu_custom_call.1} parent=1 // pred_region
      %56 = vst [vmem:[#allocation7] sm:$0xff] 0.0
      %57 = vst [vmem:[#allocation7 + $0x8] sm:$0xff] 0.0
      %58 = vst [vmem:[#allocation7 + $0x10] sm:$0xff] 0.0
      %59 = vst [vmem:[#allocation7 + $0x18] sm:$0xff] 0.0
      %60 = vst [vmem:[#allocation7 + $0x20] sm:$0xff] 0.0
      %61 = vst [vmem:[#allocation7 + $0x28] sm:$0xff] 0.0
      %62 = vst [vmem:[#allocation7 + $0x30] sm:$0xff] 0.0
      %63 = vst [vmem:[#allocation7 + $0x38] sm:$0xff] 0.0
    $region21: #{tpu_custom_call.1} parent=1 // pred_fallthru
      _
    %v64 = vld [vmem:[#allocation2] sm:$0xff]
    %v65 = vunpack.c.0.s8 %v64
    %v66 = vunpack.c.1.s8 %v64
    %v67 = vunpack.c.2.s8 %v64
    %v68 = vunpack.c.3.s8 %v64
    %v69 = vld [vmem:[#allocation5] sm:$0xff]
    %v70 = vld [vmem:[#allocation5 + $0x8] sm:$0xff]
    %v71 = vld [vmem:[#allocation5 + $0x10] sm:$0xff]
    %v72 = vld [vmem:[#allocation5 + $0x18] sm:$0xff]
    %vm73 = vcmp.eq.s32.totalorder %v65, 1
    %vm74 = vcmp.eq.s32.totalorder %v66, 1
    %vm75 = vcmp.eq.s32.totalorder %v67, 1
    %vm76 = vcmp.eq.s32.totalorder %v68, 1
    %v77 = vsel %vm73, 1, 0
    %v78 = vsel %vm74, 1, 0
    %v79 = vsel %vm75, 1, 0
    %v80 = vsel %vm76, 1, 0
    %v81 = vcvt.s32.f32 %v77
    %v82 = vcvt.s32.f32 %v78
    %v83 = vcvt.s32.f32 %v79
    %v84 = vcvt.s32.f32 %v80
    %vm85 = vcmp.eq.s32.totalorder %v65, 2
    %vm86 = vcmp.eq.s32.totalorder %v66, 2
    %vm87 = vcmp.eq.s32.totalorder %v67, 2
    %vm88 = vcmp.eq.s32.totalorder %v68, 2
    %v89 = vsel %vm85, 1, 0
    %v90 = vsel %vm86, 1, 0
    %v91 = vsel %vm87, 1, 0
    %v92 = vsel %vm88, 1, 0
    %v93 = vcvt.s32.f32 %v89
    %v94 = vcvt.s32.f32 %v90
    %v95 = vcvt.s32.f32 %v91
    %v96 = vcvt.s32.f32 %v92
    %s97 = scalar_lea.vmem [#allocation7], 48
    %v98 = vld [vmem:[%s97] sm:$0xff]
    %v99 = vadd.f32 %v81, %v82
    %v100 = vadd.f32 %v99, %v83
    %v101 = vadd.f32 %v100, %v84
    %v102 = vadd.f32 %v98, %v101
    %103 = vst [vmem:[%s97] sm:$0xff] %v102
    %s104 = scalar_lea.vmem [#allocation7], 56
    %v105 = vld [vmem:[%s104] sm:$0xff]
    %v106 = vadd.f32 %v93, %v94
    %v107 = vadd.f32 %v106, %v95
    %v108 = vadd.f32 %v107, %v96
    %v109 = vadd.f32 %v105, %v108
    %110 = vst [vmem:[%s104] sm:$0xff] %v109
    %vm111 = vcmp.gt.f32.partialorder %v69, 0.3
    %vm112 = vcmp.gt.f32.partialorder %v70, 0.3
    %vm113 = vcmp.gt.f32.partialorder %v71, 0.3
    %vm114 = vcmp.gt.f32.partialorder %v72, 0.3
    %v115 = vld [vmem:[#allocation7] sm:$0xff]
    %v116 = vsel %vm111, %v81, 0.0
    %v117 = vsel %vm112, %v82, 0.0
    %v118 = vsel %vm113, %v83, 0.0
    %v119 = vsel %vm114, %v84, 0.0
    %v120 = vadd.f32 %v116, %v117
    %v121 = vadd.f32 %v120, %v118
    %v122 = vadd.f32 %v121, %v119
    %v123 = vadd.f32 %v115, %v122
    %124 = vst [vmem:[#allocation7] sm:$0xff] %v123
    %s125 = scalar_lea.vmem [#allocation7], 24
    %v126 = vld [vmem:[%s125] sm:$0xff]
    %v127 = vsel %vm111, %v93, 0.0
    %v128 = vsel %vm112, %v94, 0.0
    %v129 = vsel %vm113, %v95, 0.0
    %v130 = vsel %vm114, %v96, 0.0
    %v131 = vadd.f32 %v127, %v128
    %v132 = vadd.f32 %v131, %v129
    %v133 = vadd.f32 %v132, %v130
    %v134 = vadd.f32 %v126, %v133
    %135 = vst [vmem:[%s125] sm:$0xff] %v134
    %vm136 = vcmp.gt.f32.partialorder %v69, 0.5
    %vm137 = vcmp.gt.f32.partialorder %v70, 0.5
    %vm138 = vcmp.gt.f32.partialorder %v71, 0.5
    %vm139 = vcmp.gt.f32.partialorder %v72, 0.5
    %s140 = scalar_lea.vmem [#allocation7], 8
    %v141 = vld [vmem:[%s140] sm:$0xff]
    %v142 = vsel %vm136, %v81, 0.0
    %v143 = vsel %vm137, %v82, 0.0
    %v144 = vsel %vm138, %v83, 0.0
    %v145 = vsel %vm139, %v84, 0.0
    %v146 = vadd.f32 %v142, %v143
    %v147 = vadd.f32 %v146, %v144
    %v148 = vadd.f32 %v147, %v145
    %v149 = vadd.f32 %v141, %v148
    %150 = vst [vmem:[%s140] sm:$0xff] %v149
    %s151 = scalar_lea.vmem [#allocation7], 32
    %v152 = vld [vmem:[%s151] sm:$0xff]
    %v153 = vsel %vm136, %v93, 0.0
    %v154 = vsel %vm137, %v94, 0.0
    %v155 = vsel %vm138, %v95, 0.0
    %v156 = vsel %vm139, %v96, 0.0
    %v157 = vadd.f32 %v153, %v154
    %v158 = vadd.f32 %v157, %v155
    %v159 = vadd.f32 %v158, %v156
    %v160 = vadd.f32 %v152, %v159
    %161 = vst [vmem:[%s151] sm:$0xff] %v160
    %vm162 = vcmp.gt.f32.partialorder %v69, 0.7
    %vm163 = vcmp.gt.f32.partialorder %v70, 0.7
    %vm164 = vcmp.gt.f32.partialorder %v71, 0.7
    %vm165 = vcmp.gt.f32.partialorder %v72, 0.7
    %s166 = scalar_lea.vmem [#allocation7], 16
    %v167 = vld [vmem:[%s166] sm:$0xff]
    %v168 = vsel %vm162, %v81, 0.0
    %v169 = vsel %vm163, %v82, 0.0
    %v170 = vsel %vm164, %v83, 0.0
    %v171 = vsel %vm165, %v84, 0.0
    %v172 = vadd.f32 %v168, %v169
    %v173 = vadd.f32 %v172, %v170
    %v174 = vadd.f32 %v173, %v171
    %v175 = vadd.f32 %v167, %v174
    %176 = vst [vmem:[%s166] sm:$0xff] %v175
    %s177 = scalar_lea.vmem [#allocation7], 40
    %v178 = vld [vmem:[%s177] sm:$0xff]
    %v179 = vsel %vm162, %v93, 0.0
    %v180 = vsel %vm163, %v94, 0.0
    %v181 = vsel %vm164, %v95, 0.0
    %v182 = vsel %vm165, %v96, 0.0
    %v183 = vadd.f32 %v179, %v180
    %v184 = vadd.f32 %v183, %v181
    %v185 = vadd.f32 %v184, %v182
    %v186 = vadd.f32 %v178, %v185
    %187 = vst [vmem:[%s177] sm:$0xff] %v186
    // Predicated region
    $region22: #{tpu_custom_call.1} parent=1 // pred_check
      _
    $region23: #{tpu_custom_call.1} parent=1 // pred_check_branch
      %189 = sbr.rel (0) target = $region25
    $region24: #{tpu_custom_call.1} parent=1 // pred_region
      %191 = vsyncadd [#allocation4], 0
      %s192 = sshll.u32 [#allocation7], 4
      %s193 = int_to_ptr.vmem [resolvable:$true] %s192
      %s194 = sshll.u32 %s2, 4
      %s195 = int_to_ptr.hbm [resolvable:$true] %s194
      %200 = dma.vmem_to_hbm [thread:$0]  %s193, 1024, %s195, [#allocation4], 128, 128, 8
    $region25: #{tpu_custom_call.1} parent=1 // pred_fallthru
      _
    // Predicated region
    $region26: #{tpu_custom_call.1} parent=1 // pred_check
      _
    $region27: #{tpu_custom_call.1} parent=1 // pred_check_branch
      %202 = sbr.rel (0) target = $region29
    $region28: #{tpu_custom_call.1} parent=1 // pred_region
      %204 = dma.done [#allocation4], 1024
    $region29: #{tpu_custom_call.1} parent=1 // pred_fallthru
      _
    %205 = vsyncpa [#allocation3], 1
    %206 = vsyncpa [#allocation6], 1
    %207 = vsyncpa [#allocation4], 1

</llo_original>
